<compile_context>
chip_gen: v5e
topology: v5e:2x2
jax: 0.10.0
libtpu: 0.0.40
codegen_flags: <defaults>
</compile_context>

<pallas_src>
import jax
import jax.numpy as jnp
from jax.experimental import pallas as pl
from jax.experimental.pallas import tpu as pltpu


def multi_input_kernel(x1_ref, x2_ref, w1_ref, b1_ref, w2_ref, b2_ref,
                       w3a_ref, w3b_ref, b3_ref, o_ref):
    # Branch 1: relu(x1 @ W1 + b1)  -> (tb, 20)
    h1 = jnp.dot(x1_ref[...], w1_ref[...], preferred_element_type=jnp.float32)
    h1 = jnp.maximum(h1 + b1_ref[...], 0.0)
    # Branch 2: relu(x2 @ W2 + b2)  -> (tb, 20)
    h2 = jnp.dot(x2_ref[...], w2_ref[...], preferred_element_type=jnp.float32)
    h2 = jnp.maximum(h2 + b2_ref[...], 0.0)
    # Head: concat(h1, h2) @ W3 + b3  ==  h1 @ W3[:20] + h2 @ W3[20:] + b3
    y = (jnp.dot(h1, w3a_ref[...], preferred_element_type=jnp.float32)
         + jnp.dot(h2, w3b_ref[...], preferred_element_type=jnp.float32)
         + b3_ref[...])
    o_ref[...] = y.astype(o_ref.dtype)


def _round_up(n, m):
    return ((n + m - 1) // m) * m


def _pick_tile(B, tile_b):
    """Batch tile: sublane-aligned, capped so grid >= 2 whenever B > 8."""
    if B <= 8:
        return B                              # block == full dim (legal)
    two_way = _round_up((B + 1) // 2, 8)      # >= 2 tiles for v7x's two TCs
    return max(8, _round_up(min(tile_b, two_way), 8))


def multi_input_net(x1, x2, params, *, tile_b=4096):
    """x1: (B, 10), x2: (B, 5) -> (B, 2)."""
    w1, b1, w2, b2, w3, b3 = (params[k] for k in
                              ("w1", "b1", "w2", "b2", "w3", "b3"))
    B = x1.shape[0]
    d1, hid = w1.shape            # (10, 20)
    d2 = w2.shape[0]              # 5
    d_out = w3.shape[1]           # 2

    # Split the head weight instead of concatenating activations (exact).
    w3a = w3[:hid]                # (20, 2) acts on branch-1 hidden
    w3b = w3[hid:]                # (20, 2) acts on branch-2 hidden
    b1_2d = b1.reshape(1, -1)
    b2_2d = b2.reshape(1, -1)
    b3_2d = b3.reshape(1, -1)

    tb = _pick_tile(B, tile_b)
    grid = (pl.cdiv(B, tb),)      # ragged last block handled by Pallas

    comp_kw = dict(dimension_semantics=("parallel",))
    if tb > 4096:
        # Headroom past the 32 MiB default scoped limit; still safely under
        # v7x's 64 MiB physical VMEM (128 MiB on v5e/v6e).
        comp_kw["vmem_limit_bytes"] = 48 << 20

    out = pl.pallas_call(
        multi_input_kernel,
        out_shape=jax.ShapeDtypeStruct((B, d_out), x1.dtype),
        grid=grid,
        in_specs=[
            pl.BlockSpec((tb, d1), lambda i: (i, 0)),       # x1 tiles
            pl.BlockSpec((tb, d2), lambda i: (i, 0)),       # x2 tiles
            pl.BlockSpec((d1, hid), lambda i: (0, 0)),      # W1   (resident)
            pl.BlockSpec((1, hid), lambda i: (0, 0)),       # b1   (resident)
            pl.BlockSpec((d2, hid), lambda i: (0, 0)),      # W2   (resident)
            pl.BlockSpec((1, hid), lambda i: (0, 0)),       # b2   (resident)
            pl.BlockSpec((hid, d_out), lambda i: (0, 0)),   # W3 top (resident)
            pl.BlockSpec((hid, d_out), lambda i: (0, 0)),   # W3 bot (resident)
            pl.BlockSpec((1, d_out), lambda i: (0, 0)),     # b3   (resident)
        ],
        out_specs=pl.BlockSpec((tb, d_out), lambda i: (i, 0)),
        compiler_params=pltpu.CompilerParams(**comp_kw),
    )(x1, x2, w1, b1_2d, w2, b2_2d, w3a, w3b, b3_2d)

    return out


def init_params(key):
    """Deterministic init matching nn.Linear shapes (stored as (in, out))."""
    ks = jax.random.split(key, 6)
    scale = 0.1
    return {
        "w1": scale * jax.random.normal(ks[0], (10, 20), jnp.float32),
        "b1": scale * jax.random.normal(ks[1], (20,), jnp.float32),
        "w2": scale * jax.random.normal(ks[2], (5, 20), jnp.float32),
        "b2": scale * jax.random.normal(ks[3], (20,), jnp.float32),
        "w3": scale * jax.random.normal(ks[4], (40, 2), jnp.float32),
        "b3": scale * jax.random.normal(ks[5], (2,), jnp.float32),
    }


def reference(x1, x2, p):
    h1 = jax.nn.relu(x1 @ p["w1"] + p["b1"])
    h2 = jax.nn.relu(x2 @ p["w2"] + p["b2"])
    return jnp.concatenate([h1, h2], axis=1) @ p["w3"] + p["b3"]


if __name__ == "__main__":
    key = jax.random.PRNGKey(0)
    k_x1, k_x2, k_p = jax.random.split(key, 3)
    params = init_params(k_p)

    # Small, module-consistent shapes: batch=8, features 10 / 5.
    B = 8
    x1 = jax.random.normal(k_x1, (B, 10), jnp.float32)
    x2 = jax.random.normal(k_x2, (B, 5), jnp.float32)

    out = jax.block_until_ready(multi_input_net(x1, x2, params))
    ref = reference(x1, x2, params)
    assert out.shape == (B, 2), out.shape
    assert jnp.allclose(out, ref, atol=1e-5, rtol=1e-5), (
        float(jnp.max(jnp.abs(out - ref))))

    # Multi-tile + ragged-edge path (no wrapper-side padding), small tile to
    # force grid > 2 with an uneven last block.
    B2 = 37
    x1b = jax.random.normal(k_x1, (B2, 10), jnp.float32)
    x2b = jax.random.normal(k_x2, (B2, 5), jnp.float32)
    outb = jax.block_until_ready(multi_input_net(x1b, x2b, params, tile_b=16))
    refb = reference(x1b, x2b, params)
    assert outb.shape == (B2, 2), outb.shape
    assert jnp.allclose(outb, refb, atol=1e-5, rtol=1e-5), (
        float(jnp.max(jnp.abs(outb - refb))))

    print("KERNEL_OK")
</pallas_src>

<mosaic_0001>
module attributes {stable_mosaic.version = 11 : i64} {
  func.func @multi_input_kernel(%arg0: i32, %arg1: memref<8x10xf32, #tpu.memory_space<vmem>>, %arg2: memref<8x5xf32, #tpu.memory_space<vmem>>, %arg3: memref<10x20xf32, #tpu.memory_space<vmem>>, %arg4: memref<1x20xf32, #tpu.memory_space<vmem>>, %arg5: memref<5x20xf32, #tpu.memory_space<vmem>>, %arg6: memref<1x20xf32, #tpu.memory_space<vmem>>, %arg7: memref<20x2xf32, #tpu.memory_space<vmem>>, %arg8: memref<20x2xf32, #tpu.memory_space<vmem>>, %arg9: memref<1x2xf32, #tpu.memory_space<vmem>>, %arg10: memref<8x2xf32, #tpu.memory_space<vmem>>) attributes {dimension_semantics = [#tpu.dimension_semantics<parallel>], iteration_bounds = array<i64: 1>, scalar_prefetch = 0 : i64, scratch_operands = 0 : i64, tpu.core_type = #tpu.core_type<tc>, window_params = [{transform_indices = @transform_0, window_bounds = array<i64: 8, 10>}, {transform_indices = @transform_1, window_bounds = array<i64: 8, 5>}, {pipeline_mode = #tpu.pipeline_mode<synchronous>, transform_indices = @transform_2, window_bounds = array<i64: 10, 20>}, {pipeline_mode = #tpu.pipeline_mode<synchronous>, transform_indices = @transform_3, window_bounds = array<i64: 1, 20>}, {pipeline_mode = #tpu.pipeline_mode<synchronous>, transform_indices = @transform_4, window_bounds = array<i64: 5, 20>}, {pipeline_mode = #tpu.pipeline_mode<synchronous>, transform_indices = @transform_5, window_bounds = array<i64: 1, 20>}, {pipeline_mode = #tpu.pipeline_mode<synchronous>, transform_indices = @transform_6, window_bounds = array<i64: 20, 2>}, {pipeline_mode = #tpu.pipeline_mode<synchronous>, transform_indices = @transform_7, window_bounds = array<i64: 20, 2>}, {pipeline_mode = #tpu.pipeline_mode<synchronous>, transform_indices = @transform_8, window_bounds = array<i64: 1, 2>}, {transform_indices = @transform_9, window_bounds = array<i64: 8, 2>}]} {
    %c0 = arith.constant 0 : index
    %c0_0 = arith.constant 0 : index
    %0 = vector.load %arg1[%c0, %c0_0] : memref<8x10xf32, #tpu.memory_space<vmem>>, vector<8x10xf32>
    %c0_1 = arith.constant 0 : index
    %c0_2 = arith.constant 0 : index
    %1 = vector.load %arg3[%c0_1, %c0_2] : memref<10x20xf32, #tpu.memory_space<vmem>>, vector<10x20xf32>
    %cst = arith.constant dense<0.000000e+00> : vector<8x20xf32>
    %2 = tpu.matmul %0, %1, %cst {dimension_numbers = #tpu.dot_dimension_numbers<[1], [0], [0], [1], [0, 0, 1, 1], [], []>} : vector<8x10xf32>, vector<10x20xf32>, vector<8x20xf32> -> vector<8x20xf32>
    %c0_3 = arith.constant 0 : index
    %c0_4 = arith.constant 0 : index
    %3 = vector.load %arg4[%c0_3, %c0_4] : memref<1x20xf32, #tpu.memory_space<vmem>>, vector<1x20xf32>
    %4 = vector.broadcast %3 : vector<1x20xf32> to vector<8x20xf32>
    %5 = arith.addf %2, %4 : vector<8x20xf32>
    %cst_5 = arith.constant 0.000000e+00 : f32
    %6 = vector.broadcast %cst_5 : f32 to vector<8x20xf32>
    %7 = arith.maximumf %5, %6 : vector<8x20xf32>
    %c0_6 = arith.constant 0 : index
    %c0_7 = arith.constant 0 : index
    %8 = vector.load %arg2[%c0_6, %c0_7] : memref<8x5xf32, #tpu.memory_space<vmem>>, vector<8x5xf32>
    %c0_8 = arith.constant 0 : index
    %c0_9 = arith.constant 0 : index
    %9 = vector.load %arg5[%c0_8, %c0_9] : memref<5x20xf32, #tpu.memory_space<vmem>>, vector<5x20xf32>
    %cst_10 = arith.constant dense<0.000000e+00> : vector<8x20xf32>
    %10 = tpu.matmul %8, %9, %cst_10 {dimension_numbers = #tpu.dot_dimension_numbers<[1], [0], [0], [1], [0, 0, 1, 1], [], []>} : vector<8x5xf32>, vector<5x20xf32>, vector<8x20xf32> -> vector<8x20xf32>
    %c0_11 = arith.constant 0 : index
    %c0_12 = arith.constant 0 : index
    %11 = vector.load %arg6[%c0_11, %c0_12] : memref<1x20xf32, #tpu.memory_space<vmem>>, vector<1x20xf32>
    %12 = vector.broadcast %11 : vector<1x20xf32> to vector<8x20xf32>
    %13 = arith.addf %10, %12 : vector<8x20xf32>
    %cst_13 = arith.constant 0.000000e+00 : f32
    %14 = vector.broadcast %cst_13 : f32 to vector<8x20xf32>
    %15 = arith.maximumf %13, %14 : vector<8x20xf32>
    %c0_14 = arith.constant 0 : index
    %c0_15 = arith.constant 0 : index
    %16 = vector.load %arg7[%c0_14, %c0_15] : memref<20x2xf32, #tpu.memory_space<vmem>>, vector<20x2xf32>
    %cst_16 = arith.constant dense<0.000000e+00> : vector<8x2xf32>
    %17 = tpu.matmul %7, %16, %cst_16 {dimension_numbers = #tpu.dot_dimension_numbers<[1], [0], [0], [1], [0, 0, 1, 1], [], []>} : vector<8x20xf32>, vector<20x2xf32>, vector<8x2xf32> -> vector<8x2xf32>
    %c0_17 = arith.constant 0 : index
    %c0_18 = arith.constant 0 : index
    %18 = vector.load %arg8[%c0_17, %c0_18] : memref<20x2xf32, #tpu.memory_space<vmem>>, vector<20x2xf32>
    %cst_19 = arith.constant dense<0.000000e+00> : vector<8x2xf32>
    %19 = tpu.matmul %15, %18, %cst_19 {dimension_numbers = #tpu.dot_dimension_numbers<[1], [0], [0], [1], [0, 0, 1, 1], [], []>} : vector<8x20xf32>, vector<20x2xf32>, vector<8x2xf32> -> vector<8x2xf32>
    %20 = arith.addf %17, %19 : vector<8x2xf32>
    %c0_20 = arith.constant 0 : index
    %c0_21 = arith.constant 0 : index
    %21 = vector.load %arg9[%c0_20, %c0_21] : memref<1x2xf32, #tpu.memory_space<vmem>>, vector<1x2xf32>
    %22 = vector.broadcast %21 : vector<1x2xf32> to vector<8x2xf32>
    %23 = arith.addf %20, %22 : vector<8x2xf32>
    %c0_22 = arith.constant 0 : index
    %c0_23 = arith.constant 0 : index
    %24 = vector.load %arg10[%c0_22, %c0_23] : memref<8x2xf32, #tpu.memory_space<vmem>>, vector<8x2xf32>
    tpu.vector_store %arg10[%c0_22, %c0_23], %23 {strides = array<i32>} : memref<8x2xf32, #tpu.memory_space<vmem>>, vector<8x2xf32>,
    return
  }
  func.func @transform_0(%arg0: i32) -> (i32, i32) {
    %c0_i32 = arith.constant 0 : i32
    %c0_i32_0 = arith.constant 0 : i32
    return %arg0, %c0_i32 : i32, i32
  }
  func.func @transform_1(%arg0: i32) -> (i32, i32) {
    %c0_i32 = arith.constant 0 : i32
    %c0_i32_0 = arith.constant 0 : i32
    return %arg0, %c0_i32 : i32, i32
  }
  func.func @transform_2(%arg0: i32) -> (i32, i32) {
    %c0_i32 = arith.constant 0 : i32
    %c0_i32_0 = arith.constant 0 : i32
    %c0_i32_1 = arith.constant 0 : i32
    return %c0_i32, %c0_i32_0 : i32, i32
  }
  func.func @transform_3(%arg0: i32) -> (i32, i32) {
    %c0_i32 = arith.constant 0 : i32
    %c0_i32_0 = arith.constant 0 : i32
    %c0_i32_1 = arith.constant 0 : i32
    return %c0_i32, %c0_i32_0 : i32, i32
  }
  func.func @transform_4(%arg0: i32) -> (i32, i32) {
    %c0_i32 = arith.constant 0 : i32
    %c0_i32_0 = arith.constant 0 : i32
    %c0_i32_1 = arith.constant 0 : i32
    return %c0_i32, %c0_i32_0 : i32, i32
  }
  func.func @transform_5(%arg0: i32) -> (i32, i32) {
    %c0_i32 = arith.constant 0 : i32
    %c0_i32_0 = arith.constant 0 : i32
    %c0_i32_1 = arith.constant 0 : i32
    return %c0_i32, %c0_i32_0 : i32, i32
  }
  func.func @transform_6(%arg0: i32) -> (i32, i32) {
    %c0_i32 = arith.constant 0 : i32
    %c0_i32_0 = arith.constant 0 : i32
    %c0_i32_1 = arith.constant 0 : i32
    return %c0_i32, %c0_i32_0 : i32, i32
  }
  func.func @transform_7(%arg0: i32) -> (i32, i32) {
    %c0_i32 = arith.constant 0 : i32
    %c0_i32_0 = arith.constant 0 : i32
    %c0_i32_1 = arith.constant 0 : i32
    return %c0_i32, %c0_i32_0 : i32, i32
  }
  func.func @transform_8(%arg0: i32) -> (i32, i32) {
    %c0_i32 = arith.constant 0 : i32
    %c0_i32_0 = arith.constant 0 : i32
    %c0_i32_1 = arith.constant 0 : i32
    return %c0_i32, %c0_i32_0 : i32, i32
  }
  func.func @transform_9(%arg0: i32) -> (i32, i32) {
    %c0_i32 = arith.constant 0 : i32
    %c0_i32_0 = arith.constant 0 : i32
    return %arg0, %c0_i32 : i32, i32
  }
}

</mosaic_0001>

<llo_original>
// kernel: tpu_custom_call.1
$region0: #{tpu_custom_call.1}
  #allocation0 [shape = 'u32[]', space=smem, size = 0x4, offset = 0x4, fixed_abs, tag = 'smem constant byte address 0x4 - core index']
  #allocation1 [shape = 'u32[72,128]{1,0:T(1,128)}', space=vmem, size = 0x9000, scoped, tag = 'internal scratch']
  %s0 = inlined_call_operand.vmem [shape: f32[8,10], index: 0, kind: input, shape index: {}]
  %s1 = inlined_call_operand.vmem [shape: f32[8,5], index: 1, kind: input, shape index: {}]
  %s2 = inlined_call_operand.vmem [shape: f32[10,20], index: 2, kind: input, shape index: {}]
  %s3 = inlined_call_operand.vmem [shape: f32[1,20], index: 3, kind: input, shape index: {}]
  %s4 = inlined_call_operand.vmem [shape: f32[5,20], index: 4, kind: input, shape index: {}]
  %s5 = inlined_call_operand.vmem [shape: f32[1,20], index: 5, kind: input, shape index: {}]
  %s6 = inlined_call_operand.vmem [shape: f32[20,2], index: 6, kind: input, shape index: {}]
  %s7 = inlined_call_operand.vmem [shape: f32[20,2], index: 7, kind: input, shape index: {}]
  %s8 = inlined_call_operand.vmem [shape: f32[1,2], index: 8, kind: input, shape index: {}]
  %s9 = inlined_call_operand.vmem [shape: f32[8,2], index: 9, kind: output, shape index: {}]
  %s10 = sld [smem:[#allocation0]]
  $region46: #{tpu_custom_call.1} parent=0
    _
  %s12 = ssub.s32 1, %s10
  %s13 = scalar_select 0, %s12, %s10
  // Predicated region
  $region2: #{tpu_custom_call.1} parent=0 // pred_check
    _
  $region3: #{tpu_custom_call.1} parent=0 // pred_check_branch
    %15 = sbr.rel (0) target = $region5
  $region4: #{tpu_custom_call.1} parent=0 // pred_region
    _
  $region5: #{tpu_custom_call.1} parent=0 // pred_fallthru
    _
  // Predicated region
  $region6: #{tpu_custom_call.1} parent=0 // pred_check
    _
  $region7: #{tpu_custom_call.1} parent=0 // pred_check_branch
    %17 = sbr.rel (0) target = $region9
  $region8: #{tpu_custom_call.1} parent=0 // pred_region
    _
  $region9: #{tpu_custom_call.1} parent=0 // pred_fallthru
    _
  // Predicated region
  $region10: #{tpu_custom_call.1} parent=0 // pred_check
    _
  $region11: #{tpu_custom_call.1} parent=0 // pred_check_branch
    %19 = sbr.rel (0) target = $region13
  $region12: #{tpu_custom_call.1} parent=0 // pred_region
    _
  $region13: #{tpu_custom_call.1} parent=0 // pred_fallthru
    _
  // Predicated region
  $region14: #{tpu_custom_call.1} parent=0 // pred_check
    _
  $region15: #{tpu_custom_call.1} parent=0 // pred_check_branch
    %21 = sbr.rel (0) target = $region17
  $region16: #{tpu_custom_call.1} parent=0 // pred_region
    _
  $region17: #{tpu_custom_call.1} parent=0 // pred_fallthru
    _
  // Predicated region
  $region18: #{tpu_custom_call.1} parent=0 // pred_check
    _
  $region19: #{tpu_custom_call.1} parent=0 // pred_check_branch
    %23 = sbr.rel (0) target = $region21
  $region20: #{tpu_custom_call.1} parent=0 // pred_region
    _
  $region21: #{tpu_custom_call.1} parent=0 // pred_fallthru
    _
  // Predicated region
  $region22: #{tpu_custom_call.1} parent=0 // pred_check
    _
  $region23: #{tpu_custom_call.1} parent=0 // pred_check_branch
    %25 = sbr.rel (0) target = $region25
  $region24: #{tpu_custom_call.1} parent=0 // pred_region
    _
  $region25: #{tpu_custom_call.1} parent=0 // pred_fallthru
    _
  // Predicated region
  $region26: #{tpu_custom_call.1} parent=0 // pred_check
    _
  $region27: #{tpu_custom_call.1} parent=0 // pred_check_branch
    %27 = sbr.rel (0) target = $region29
  $region28: #{tpu_custom_call.1} parent=0 // pred_region
    _
  $region29: #{tpu_custom_call.1} parent=0 // pred_fallthru
    _
  // Predicated region
  $region30: #{tpu_custom_call.1} parent=0 // pred_check
    _
  $region31: #{tpu_custom_call.1} parent=0 // pred_check_branch
    %29 = sbr.rel (0) target = $region33
  $region32: #{tpu_custom_call.1} parent=0 // pred_region
    _
  $region33: #{tpu_custom_call.1} parent=0 // pred_fallthru
    _
  // Predicated region
  $region34: #{tpu_custom_call.1} parent=0 // pred_check
    _
  $region35: #{tpu_custom_call.1} parent=0 // pred_check_branch
    %31 = sbr.rel (0) target = $region37
  $region36: #{tpu_custom_call.1} parent=0 // pred_region
    _
  $region37: #{tpu_custom_call.1} parent=0 // pred_fallthru
    _
  %v32 = vld [vmem:[%s0] sm:$0xff]
  %v33 = vld [vmem:[%s2] sm:$0xff]
  %v34 = vld [vmem:[%s2 + $0x8] sm:$0x3]
  %v35 = vld [vmem:[%s3] sm:$0x1]
  %v37 = vperm.slane %v35, 0
  %vm39 = vcmask 80896
  %v41 = vsel %vm39, %v32, 0
  %vm43 = vcmask 1041408
  %v45 = vsel %vm43, %v34, 0
  %47 = vmatpush.msra.mxu0 0.0
  %48 = vmatpush.msra.mxu0 0.0
  %49 = vmatpush.msra.mxu0 0.0
  %50 = vmatpush.msra.mxu0 0.0
  %51 = vmatpush.msra.mxu0 0.0
  %52 = vmatpush.msra.mxu0 0.0
  %53 = vmatpush.msra.mxu0 0.0
  %54 = vmatpush.msra.mxu0 0.0
  %55 = vmatpush.msra.mxu0 0.0
  %56 = vmatpush.msra.mxu0 0.0
  %57 = vmatpush.msra.mxu0 0.0
  %58 = vmatpush.msra.mxu0 0.0
  %59 = vmatpush.msra.mxu0 0.0
  %60 = vmatpush.msra.mxu0 0.0
  %61 = vmatpush.msra.mxu0 %v45
  %62 = vmatpush.msra.mxu0 %v33
  %63 = vmatmul.f32.gmra.mxu0 %v41
  %v64 = vpop.f32.mrf.mxu0
  %v65 = vadd.f32 %v37, %v64
  %66 = vdwg.mxu0
  %v67 = vmax.f32 %v65, 0.0
  %v68 = vld [vmem:[%s1] sm:$0xff]
  %v69 = vld [vmem:[%s4] sm:$0x1f]
  %v70 = vld [vmem:[%s5] sm:$0x1]
  %v72 = vperm.slane %v70, 0
  %vm74 = vcmask 39936
  %v76 = vsel %vm74, %v68, 0
  %vm78 = vcmask 1044480
  %v80 = vsel %vm78, %v69, 0
  %82 = vmatpush.msra.mxu0 0.0
  %83 = vmatpush.msra.mxu0 0.0
  %84 = vmatpush.msra.mxu0 0.0
  %85 = vmatpush.msra.mxu0 0.0
  %86 = vmatpush.msra.mxu0 0.0
  %87 = vmatpush.msra.mxu0 0.0
  %88 = vmatpush.msra.mxu0 0.0
  %89 = vmatpush.msra.mxu0 0.0
  %90 = vmatpush.msra.mxu0 0.0
  %91 = vmatpush.msra.mxu0 0.0
  %92 = vmatpush.msra.mxu0 0.0
  %93 = vmatpush.msra.mxu0 0.0
  %94 = vmatpush.msra.mxu0 0.0
  %95 = vmatpush.msra.mxu0 0.0
  %96 = vmatpush.msra.mxu0 0.0
  %97 = vmatpush.msra.mxu0 %v80
  %98 = vmatmul.f32.gmra.mxu0 %v76
  %v99 = vpop.f32.mrf.mxu0
  %v100 = vadd.f32 %v72, %v99
  %101 = vdwg.mxu0
  %v102 = vmax.f32 %v100, 0.0
  %v103 = vld [vmem:[%s6] sm:$0xff]
  %v104 = vld [vmem:[%s6 + $0x8] sm:$0xff]
  %v105 = vld [vmem:[%s6 + $0x10] sm:$0xf]
  %v106 = vld [vmem:[%s7] sm:$0xff]
  %v107 = vld [vmem:[%s7 + $0x8] sm:$0xff]
  %v108 = vld [vmem:[%s7 + $0x10] sm:$0xf]
  %vm109 = vcmask 162816
  %v111 = vsel %vm109, %v102, 0
  %vm113 = vcmask 1043456
  %v115 = vsel %vm113, %v108, 0
  %117 = vmatpush.msra.mxu0 0.0
  %118 = vmatpush.msra.mxu0 0.0
  %119 = vmatpush.msra.mxu0 0.0
  %120 = vmatpush.msra.mxu0 0.0
  %121 = vmatpush.msra.mxu0 0.0
  %122 = vmatpush.msra.mxu0 0.0
  %123 = vmatpush.msra.mxu0 0.0
  %124 = vmatpush.msra.mxu0 0.0
  %125 = vmatpush.msra.mxu0 0.0
  %126 = vmatpush.msra.mxu0 0.0
  %127 = vmatpush.msra.mxu0 0.0
  %128 = vmatpush.msra.mxu0 0.0
  %129 = vmatpush.msra.mxu0 0.0
  %130 = vmatpush.msra.mxu0 %v115
  %131 = vmatpush.msra.mxu0 %v107
  %132 = vmatpush.msra.mxu0 %v106
  %133 = vmatmul.f32.gmra.mxu0 %v111
  %v134 = vpop.f32.mrf.mxu0
  %v135 = vadd.f32 0.0, %v134
  %136 = vdwg.mxu0
  %v138 = vsel %vm109, %v67, 0
  %v141 = vsel %vm113, %v105, 0
  %143 = vmatpush.msra.mxu0 0.0
  %144 = vmatpush.msra.mxu0 0.0
  %145 = vmatpush.msra.mxu0 0.0
  %146 = vmatpush.msra.mxu0 0.0
  %147 = vmatpush.msra.mxu0 0.0
  %148 = vmatpush.msra.mxu0 0.0
  %149 = vmatpush.msra.mxu0 0.0
  %150 = vmatpush.msra.mxu0 0.0
  %151 = vmatpush.msra.mxu0 0.0
  %152 = vmatpush.msra.mxu0 0.0
  %153 = vmatpush.msra.mxu0 0.0
  %154 = vmatpush.msra.mxu0 0.0
  %155 = vmatpush.msra.mxu0 0.0
  %156 = vmatpush.msra.mxu0 %v141
  %157 = vmatpush.msra.mxu0 %v104
  %158 = vmatpush.msra.mxu0 %v103
  %159 = vmatmul.f32.gmra.mxu0 %v138
  %v160 = vpop.f32.mrf.mxu0
  %v161 = vadd.f32 %v135, %v160
  %162 = vdwg.mxu0
  %v163 = vld [vmem:[%s8] sm:$0x1]
  %v165 = vperm.slane %v163, 0
  %v167 = vadd.f32 %v161, %v165
  %vm168 = vcmask 15360
  %169 = vst.msk [vmem:[%s9] sm:$0xff] %vm168, %v167
  // Predicated region
  $region38: #{tpu_custom_call.1} parent=0 // pred_check
    _
  $region39: #{tpu_custom_call.1} parent=0 // pred_check_branch
    %171 = sbr.rel (0) target = $region41
  $region40: #{tpu_custom_call.1} parent=0 // pred_region
    _
  $region41: #{tpu_custom_call.1} parent=0 // pred_fallthru
    _
  // Predicated region
  $region42: #{tpu_custom_call.1} parent=0 // pred_check
    _
  $region43: #{tpu_custom_call.1} parent=0 // pred_check_branch
    %173 = sbr.rel (0) target = $region45
  $region44: #{tpu_custom_call.1} parent=0 // pred_region
    _
  $region45: #{tpu_custom_call.1} parent=0 // pred_fallthru
    _

</llo_original>
